<compile_context>
chip_gen: v6e
topology: v6e:2x2x1
jax: 0.10.0
libtpu: 0.0.40
codegen_flags: <defaults>
</compile_context>

<pallas_src>
import math
from functools import partial

import jax
import jax.numpy as jnp
from jax.experimental import pallas as pl
from jax.experimental.pallas import tpu as pltpu

LANE = 128     # vreg lane width: pad all feature dims to a multiple of this
SUBLANE = 8    # sublane granularity for the batch (second-minor) dim


def _round_up(x: int, m: int) -> int:
    return (x + m - 1) // m * m


def make_mlp_kernel(n_layers: int):
    """Fused MLP kernel. refs = (x_tile, w0, b0, w1, b1, ..., out_tile)."""

    def kernel(*refs):
        x_ref = refs[0]
        out_ref = refs[-1]
        param_refs = refs[1:-1]

        h = x_ref[...]                                        # bf16 [TM, in_pad]
        for i in range(n_layers):
            w = param_refs[2 * i][...]                        # bf16 [in_pad_i, out_pad_i]
            b = param_refs[2 * i + 1][...]                    # f32  [1,  out_pad_i]
            acc = jnp.dot(h, w, preferred_element_type=jnp.float32) + b
            if i < n_layers - 1:
                h = jnp.maximum(acc, 0.0).astype(jnp.bfloat16)  # ReLU, back to bf16 for MXU
            else:
                h = acc                                       # final layer stays f32
        out_ref[...] = h.astype(out_ref.dtype)

    return kernel


@partial(jax.jit, static_argnames=("tm",))
def mlp_forward(x, params, *, tm: int = 512):
    """x: [n_batch, n_inputs] f32. params: list of (W [in, out], b [1, out]) f32 per layer."""
    n_batch, n_in = x.shape
    n_layers = len(params)
    n_out = params[-1][0].shape[1]

    # Lane-dense padded widths for every layer boundary.
    dims = [n_in] + [w.shape[1] for w, _ in params]
    dims_pad = [_round_up(d, LANE) for d in dims]

    # Batch tile / padded batch (tile is a multiple of 8; padded batch a multiple of the tile).
    padded_b = _round_up(n_batch, SUBLANE)
    tm = min(tm, padded_b)
    padded_b = _round_up(padded_b, tm)

    # Zero-pad + cast inputs and parameters (zero rows/cols contribute exactly 0 to matmuls).
    x_p = jnp.pad(
        x.astype(jnp.bfloat16),
        ((0, padded_b - n_batch), (0, dims_pad[0] - n_in)),
    )

    flat = []
    for li, (w, b) in enumerate(params):
        w_p = jnp.pad(
            w.astype(jnp.bfloat16),
            ((0, dims_pad[li] - dims[li]), (0, dims_pad[li + 1] - dims[li + 1])),
        )
        b_p = jnp.pad(
            b.reshape(1, -1).astype(jnp.float32),
            ((0, 0), (0, dims_pad[li + 1] - dims[li + 1])),
        )
        flat += [w_p, b_p]

    grid = (pl.cdiv(padded_b, tm),)

    # x/out tiles move with the grid; weights/biases are VMEM-resident (constant block index).
    in_specs = [pl.BlockSpec((tm, dims_pad[0]), lambda i: (i, 0))]
    for li in range(n_layers):
        in_specs.append(pl.BlockSpec((dims_pad[li], dims_pad[li + 1]), lambda i: (0, 0)))
        in_specs.append(pl.BlockSpec((1, dims_pad[li + 1]), lambda i: (0, 0)))
    out_spec = pl.BlockSpec((tm, dims_pad[-1]), lambda i: (i, 0))

    # Cost hint for XLA's scheduler.
    flops = 2 * padded_b * sum(dims_pad[i] * dims_pad[i + 1] for i in range(n_layers))
    param_bytes = sum(a.size * a.dtype.itemsize for a in flat)
    bytes_accessed = x_p.size * x_p.dtype.itemsize + param_bytes + padded_b * dims_pad[-1] * 4
    cost = pl.CostEstimate(flops=flops, transcendentals=0, bytes_accessed=bytes_accessed)

    # VMEM budget: resident params + double-buffered x/out tiles + widest f32 intermediate,
    # with 2x headroom; clamp to [16 MiB, 64 MiB] so it fits v7x physical VMEM.
    tile_bytes = 2 * (tm * dims_pad[0] * 2 + tm * dims_pad[-1] * 4)
    interm_bytes = tm * max(dims_pad) * 4
    vmem_limit = int(min(64 << 20, max(16 << 20, 2 * (param_bytes + tile_bytes + interm_bytes))))

    out_p = pl.pallas_call(
        make_mlp_kernel(n_layers),
        out_shape=jax.ShapeDtypeStruct((padded_b, dims_pad[-1]), jnp.float32),
        grid=grid,
        in_specs=in_specs,
        out_specs=out_spec,
        compiler_params=pltpu.CompilerParams(
            dimension_semantics=("parallel",),   # shards batch tiles across v7x's 2 TCs
            vmem_limit_bytes=vmem_limit,
        ),
        cost_estimate=cost,
    )(x_p, *flat)

    return out_p[:n_batch, :n_out]


def init_linear_params(key, in_features, out_features):
    """Match torch.nn.Linear default init (uniform +/- 1/sqrt(fan_in)); W stored as [in, out]."""
    k_w, k_b = jax.random.split(key)
    bound = 1.0 / math.sqrt(in_features)
    w = jax.random.uniform(k_w, (in_features, out_features), jnp.float32, -bound, bound)
    b = jax.random.uniform(k_b, (1, out_features), jnp.float32, -bound, bound)
    return w, b


def mlp_reference_f32(x, params):
    """Pure f32 reference (PyTorch semantics)."""
    h = x
    for i, (w, b) in enumerate(params):
        h = h @ w + b
        if i < len(params) - 1:
            h = jnp.maximum(h, 0.0)
    return h


def mlp_reference_matched(x, params):
    """Reference with the same bf16 operand rounding / f32 accumulation as the kernel."""
    h = x.astype(jnp.bfloat16)
    for i, (w, b) in enumerate(params):
        acc = jnp.dot(h, w.astype(jnp.bfloat16), preferred_element_type=jnp.float32)
        acc = acc + b.reshape(1, -1).astype(jnp.float32)
        if i < len(params) - 1:
            h = jnp.maximum(acc, 0.0).astype(jnp.bfloat16)
        else:
            h = acc
    return h


if __name__ == "__main__":
    # Small, NeuralNet-consistent shapes: layers = [n_inputs] + hidden + [n_outputs]
    n_batch, n_inputs, hidden, n_outputs = 8, 16, [32], 4
    layer_sizes = [n_inputs] + hidden + [n_outputs]

    key = jax.random.PRNGKey(0)
    key_x, *layer_keys = jax.random.split(key, len(layer_sizes))

    x = jax.random.normal(key_x, (n_batch, n_inputs), jnp.float32)
    params = [
        init_linear_params(layer_keys[i], layer_sizes[i], layer_sizes[i + 1])
        for i in range(len(layer_sizes) - 1)
    ]

    out = mlp_forward(x, params)
    out = jax.block_until_ready(out)
    assert out.shape == (n_batch, n_outputs), out.shape

    # Tight check vs a reference that uses the same bf16 operand rounding as the kernel.
    ref_matched = mlp_reference_matched(x, params)
    assert jnp.allclose(out, ref_matched, atol=2e-3, rtol=2e-3), "mismatch vs matched reference"

    # Loose sanity check vs the pure-f32 PyTorch-semantics reference (bf16 MXU operands).
    ref_f32 = mlp_reference_f32(x, params)
    assert jnp.allclose(out, ref_f32, atol=5e-2, rtol=5e-2), "mismatch vs f32 reference"

    print("KERNEL_OK")
</pallas_src>

<mosaic_0001>
module attributes {stable_mosaic.version = 11 : i64} {
  func.func @kernel(%arg0: i32, %arg1: memref<8x128xbf16, #tpu.memory_space<vmem>>, %arg2: memref<128x128xbf16, #tpu.memory_space<vmem>>, %arg3: memref<1x128xf32, #tpu.memory_space<vmem>>, %arg4: memref<128x128xbf16, #tpu.memory_space<vmem>>, %arg5: memref<1x128xf32, #tpu.memory_space<vmem>>, %arg6: memref<8x128xf32, #tpu.memory_space<vmem>>) attributes {dimension_semantics = [#tpu.dimension_semantics<parallel>], iteration_bounds = array<i64: 1>, scalar_prefetch = 0 : i64, scratch_operands = 0 : i64, tpu.core_type = #tpu.core_type<tc>, window_params = [{transform_indices = @transform_0, window_bounds = array<i64: 8, 128>}, {pipeline_mode = #tpu.pipeline_mode<synchronous>, transform_indices = @transform_1, window_bounds = array<i64: 128, 128>}, {pipeline_mode = #tpu.pipeline_mode<synchronous>, transform_indices = @transform_2, window_bounds = array<i64: 1, 128>}, {pipeline_mode = #tpu.pipeline_mode<synchronous>, transform_indices = @transform_3, window_bounds = array<i64: 128, 128>}, {pipeline_mode = #tpu.pipeline_mode<synchronous>, transform_indices = @transform_4, window_bounds = array<i64: 1, 128>}, {transform_indices = @transform_5, window_bounds = array<i64: 8, 128>}]} {
    %c0 = arith.constant 0 : index
    %c0_0 = arith.constant 0 : index
    %0 = vector.load %arg1[%c0, %c0_0] : memref<8x128xbf16, #tpu.memory_space<vmem>>, vector<8x128xbf16>
    %c0_1 = arith.constant 0 : index
    %c0_2 = arith.constant 0 : index
    %1 = vector.load %arg2[%c0_1, %c0_2] : memref<128x128xbf16, #tpu.memory_space<vmem>>, vector<128x128xbf16>
    %c0_3 = arith.constant 0 : index
    %c0_4 = arith.constant 0 : index
    %2 = vector.load %arg3[%c0_3, %c0_4] : memref<1x128xf32, #tpu.memory_space<vmem>>, vector<1x128xf32>
    %cst = arith.constant dense<0.000000e+00> : vector<8x128xf32>
    %3 = tpu.matmul %0, %1, %cst {dimension_numbers = #tpu.dot_dimension_numbers<[1], [0], [0], [1], [0, 0, 1, 1], [], []>} : vector<8x128xbf16>, vector<128x128xbf16>, vector<8x128xf32> -> vector<8x128xf32>
    %4 = vector.broadcast %2 : vector<1x128xf32> to vector<8x128xf32>
    %5 = arith.addf %3, %4 : vector<8x128xf32>
    %cst_5 = arith.constant 0.000000e+00 : f32
    %6 = vector.broadcast %cst_5 : f32 to vector<8x128xf32>
    %7 = arith.maximumf %5, %6 : vector<8x128xf32>
    %8 = arith.truncf %7 : vector<8x128xf32> to vector<8x128xbf16>
    %c0_6 = arith.constant 0 : index
    %c0_7 = arith.constant 0 : index
    %9 = vector.load %arg4[%c0_6, %c0_7] : memref<128x128xbf16, #tpu.memory_space<vmem>>, vector<128x128xbf16>
    %c0_8 = arith.constant 0 : index
    %c0_9 = arith.constant 0 : index
    %10 = vector.load %arg5[%c0_8, %c0_9] : memref<1x128xf32, #tpu.memory_space<vmem>>, vector<1x128xf32>
    %cst_10 = arith.constant dense<0.000000e+00> : vector<8x128xf32>
    %11 = tpu.matmul %8, %9, %cst_10 {dimension_numbers = #tpu.dot_dimension_numbers<[1], [0], [0], [1], [0, 0, 1, 1], [], []>} : vector<8x128xbf16>, vector<128x128xbf16>, vector<8x128xf32> -> vector<8x128xf32>
    %12 = vector.broadcast %10 : vector<1x128xf32> to vector<8x128xf32>
    %13 = arith.addf %11, %12 : vector<8x128xf32>
    %c0_11 = arith.constant 0 : index
    %c0_12 = arith.constant 0 : index
    %14 = vector.load %arg6[%c0_11, %c0_12] : memref<8x128xf32, #tpu.memory_space<vmem>>, vector<8x128xf32>
    tpu.vector_store %arg6[%c0_11, %c0_12], %13 {strides = array<i32>} : memref<8x128xf32, #tpu.memory_space<vmem>>, vector<8x128xf32>,
    return
  }
  func.func @transform_0(%arg0: i32) -> (i32, i32) {
    %c0_i32 = arith.constant 0 : i32
    %c0_i32_0 = arith.constant 0 : i32
    return %arg0, %c0_i32 : i32, i32
  }
  func.func @transform_1(%arg0: i32) -> (i32, i32) {
    %c0_i32 = arith.constant 0 : i32
    %c0_i32_0 = arith.constant 0 : i32
    %c0_i32_1 = arith.constant 0 : i32
    return %c0_i32, %c0_i32_0 : i32, i32
  }
  func.func @transform_2(%arg0: i32) -> (i32, i32) {
    %c0_i32 = arith.constant 0 : i32
    %c0_i32_0 = arith.constant 0 : i32
    %c0_i32_1 = arith.constant 0 : i32
    return %c0_i32, %c0_i32_0 : i32, i32
  }
  func.func @transform_3(%arg0: i32) -> (i32, i32) {
    %c0_i32 = arith.constant 0 : i32
    %c0_i32_0 = arith.constant 0 : i32
    %c0_i32_1 = arith.constant 0 : i32
    return %c0_i32, %c0_i32_0 : i32, i32
  }
  func.func @transform_4(%arg0: i32) -> (i32, i32) {
    %c0_i32 = arith.constant 0 : i32
    %c0_i32_0 = arith.constant 0 : i32
    %c0_i32_1 = arith.constant 0 : i32
    return %c0_i32, %c0_i32_0 : i32, i32
  }
  func.func @transform_5(%arg0: i32) -> (i32, i32) {
    %c0_i32 = arith.constant 0 : i32
    %c0_i32_0 = arith.constant 0 : i32
    return %arg0, %c0_i32 : i32, i32
  }
}

</mosaic_0001>

<llo_original>
// kernel: mlp_forward.1
$region0: #{mlp_forward.1}
  #allocation0 [shape = 'u32[]', space=smem, size = 0x4, offset = 0x4, fixed_abs, tag = 'smem constant byte address 0x4 - core index']
  #allocation1 [shape = 'u32[144,128]{1,0:T(1,128)}', space=vmem, size = 0x12000, scoped, tag = 'internal scratch']
  %s0 = inlined_call_operand.vmem [shape: bf16[8,128], index: 0, kind: input, shape index: {}]
  %s1 = inlined_call_operand.vmem [shape: bf16[128,128], index: 1, kind: input, shape index: {}]
  %s2 = inlined_call_operand.vmem [shape: f32[1,128], index: 2, kind: input, shape index: {}]
  %s3 = inlined_call_operand.vmem [shape: bf16[128,128], index: 3, kind: input, shape index: {}]
  %s4 = inlined_call_operand.vmem [shape: f32[1,128], index: 4, kind: input, shape index: {}]
  %s5 = inlined_call_operand.vmem [shape: f32[8,128], index: 5, kind: output, shape index: {}]
  %s6 = sld [smem:[#allocation0]]
  $region30: #{mlp_forward.1} parent=0
    _
  %s8 = ssub.s32 1, %s6
  %s9 = scalar_select 0, %s8, %s6
  // Predicated region
  $region2: #{mlp_forward.1} parent=0 // pred_check
    _
  $region3: #{mlp_forward.1} parent=0 // pred_check_branch
    %11 = sbr.rel (0) target = $region5
  $region4: #{mlp_forward.1} parent=0 // pred_region
    _
  $region5: #{mlp_forward.1} parent=0 // pred_fallthru
    _
  // Predicated region
  $region6: #{mlp_forward.1} parent=0 // pred_check
    _
  $region7: #{mlp_forward.1} parent=0 // pred_check_branch
    %13 = sbr.rel (0) target = $region9
  $region8: #{mlp_forward.1} parent=0 // pred_region
    _
  $region9: #{mlp_forward.1} parent=0 // pred_fallthru
    _
  // Predicated region
  $region10: #{mlp_forward.1} parent=0 // pred_check
    _
  $region11: #{mlp_forward.1} parent=0 // pred_check_branch
    %15 = sbr.rel (0) target = $region13
  $region12: #{mlp_forward.1} parent=0 // pred_region
    _
  $region13: #{mlp_forward.1} parent=0 // pred_fallthru
    _
  // Predicated region
  $region14: #{mlp_forward.1} parent=0 // pred_check
    _
  $region15: #{mlp_forward.1} parent=0 // pred_check_branch
    %17 = sbr.rel (0) target = $region17
  $region16: #{mlp_forward.1} parent=0 // pred_region
    _
  $region17: #{mlp_forward.1} parent=0 // pred_fallthru
    _
  // Predicated region
  $region18: #{mlp_forward.1} parent=0 // pred_check
    _
  $region19: #{mlp_forward.1} parent=0 // pred_check_branch
    %19 = sbr.rel (0) target = $region21
  $region20: #{mlp_forward.1} parent=0 // pred_region
    _
  $region21: #{mlp_forward.1} parent=0 // pred_fallthru
    _
  %v21 = vld [vmem:[%s0] sm:$0xf]
  %v22 = vld [vmem:[%s1] sm:$0xf]
  %v23 = vld [vmem:[%s1 + $0x4] sm:$0xf]
  %v24 = vld [vmem:[%s1 + $0x8] sm:$0xf]
  %v25 = vld [vmem:[%s1 + $0xc] sm:$0xf]
  %v26 = vld [vmem:[%s1 + $0x10] sm:$0xf]
  %v27 = vld [vmem:[%s1 + $0x14] sm:$0xf]
  %v28 = vld [vmem:[%s1 + $0x18] sm:$0xf]
  %v29 = vld [vmem:[%s1 + $0x1c] sm:$0xf]
  %v30 = vld [vmem:[%s1 + $0x20] sm:$0xf]
  %v31 = vld [vmem:[%s1 + $0x24] sm:$0xf]
  %v32 = vld [vmem:[%s1 + $0x28] sm:$0xf]
  %v33 = vld [vmem:[%s1 + $0x2c] sm:$0xf]
  %v34 = vld [vmem:[%s1 + $0x30] sm:$0xf]
  %v35 = vld [vmem:[%s1 + $0x34] sm:$0xf]
  %v36 = vld [vmem:[%s1 + $0x38] sm:$0xf]
  %v37 = vld [vmem:[%s1 + $0x3c] sm:$0xf]
  %v38 = vld [vmem:[%s2] sm:$0x1]
  %v40 = vlaneseq
  %v41 = vshrl.u32 %v40, 7
  %v42 = vsub.s32 0, %v41
  %v43 = vrot.slane %v38, %v42
  %v61 = vunpack.c.l.b16 %v22
  %v62 = vunpack.c.l.b16 %v23
  %v63 = vunpack.c.l.b16 %v24
  %v64 = vunpack.c.l.b16 %v25
  %v65 = vunpack.c.l.b16 %v26
  %v66 = vunpack.c.l.b16 %v27
  %v67 = vunpack.c.l.b16 %v28
  %v68 = vunpack.c.l.b16 %v29
  %v69 = vunpack.c.l.b16 %v30
  %v70 = vunpack.c.l.b16 %v31
  %v71 = vunpack.c.l.b16 %v32
  %v72 = vunpack.c.l.b16 %v33
  %v73 = vunpack.c.l.b16 %v34
  %v74 = vunpack.c.l.b16 %v35
  %v75 = vunpack.c.l.b16 %v36
  %v76 = vunpack.c.l.b16 %v37
  %v77 = vpack.c.b16 %v62, %v61
  %v78 = vpack.c.b16 %v64, %v63
  %v79 = vpack.c.b16 %v66, %v65
  %v80 = vpack.c.b16 %v68, %v67
  %v81 = vpack.c.b16 %v70, %v69
  %v82 = vpack.c.b16 %v72, %v71
  %v83 = vpack.c.b16 %v74, %v73
  %v84 = vpack.c.b16 %v76, %v75
  %93 = vmatprep.subr.bf16.mxu0 0
  %94 = vmatpush1.bf16.msra.mxu0 %v84
  %95 = vmatprep.subr.bf16.mxu0 0
  %96 = vmatpush1.bf16.msra.mxu0 %v83
  %97 = vmatprep.subr.bf16.mxu0 0
  %98 = vmatpush1.bf16.msra.mxu0 %v82
  %99 = vmatprep.subr.bf16.mxu0 0
  %100 = vmatpush1.bf16.msra.mxu0 %v81
  %101 = vmatprep.subr.bf16.mxu0 0
  %102 = vmatpush1.bf16.msra.mxu0 %v80
  %103 = vmatprep.subr.bf16.mxu0 0
  %104 = vmatpush1.bf16.msra.mxu0 %v79
  %105 = vmatprep.subr.bf16.mxu0 0
  %106 = vmatpush1.bf16.msra.mxu0 %v78
  %107 = vmatprep.subr.bf16.mxu0 0
  %108 = vmatpush1.bf16.msra.mxu0 %v77
  %109 = vmatprep.subr.bf16.mxu0 0
  %110 = vmatpush2.bf16.msra.mxu0 0
  %111 = vmatprep.subr.bf16.mxu0 0
  %112 = vmatpush2.bf16.msra.mxu0 0
  %113 = vmatprep.subr.bf16.mxu0 0
  %114 = vmatpush2.bf16.msra.mxu0 0
  %115 = vmatprep.subr.bf16.mxu0 0
  %116 = vmatpush2.bf16.msra.mxu0 0
  %117 = vmatprep.subr.bf16.mxu0 0
  %118 = vmatpush2.bf16.msra.mxu0 0
  %119 = vmatprep.subr.bf16.mxu0 0
  %120 = vmatpush2.bf16.msra.mxu0 0
  %121 = vmatprep.subr.bf16.mxu0 0
  %122 = vmatpush2.bf16.msra.mxu0 0
  %123 = vmatprep.subr.bf16.mxu0 0
  %124 = vmatpush2.bf16.msra.mxu0 0
  %125 = vmatprep.mubr.bf16.mxu0 0
  %126 = vmatmul.mubr.bf16.gmra.mxu0 %v21
  %v127 = vpop.f32.mrf.mxu0
  %v128 = vadd.f32 %v43, %v127
  %v129 = vpop.f32.mrf.mxu0
  %v130 = vpop.f32.mrf.mxu0
  %v131 = vpop.f32.mrf.mxu0
  %132 = vdwg.mxu0
  %v133 = vmax.f32 %v128, 0.0
  %v134 = vpack.c.bf16 %v133, %v133
  %v135 = vld [vmem:[%s3] sm:$0xf]
  %v136 = vld [vmem:[%s3 + $0x4] sm:$0xf]
  %v137 = vld [vmem:[%s3 + $0x8] sm:$0xf]
  %v138 = vld [vmem:[%s3 + $0xc] sm:$0xf]
  %v139 = vld [vmem:[%s3 + $0x10] sm:$0xf]
  %v140 = vld [vmem:[%s3 + $0x14] sm:$0xf]
  %v141 = vld [vmem:[%s3 + $0x18] sm:$0xf]
  %v142 = vld [vmem:[%s3 + $0x1c] sm:$0xf]
  %v143 = vld [vmem:[%s3 + $0x20] sm:$0xf]
  %v144 = vld [vmem:[%s3 + $0x24] sm:$0xf]
  %v145 = vld [vmem:[%s3 + $0x28] sm:$0xf]
  %v146 = vld [vmem:[%s3 + $0x2c] sm:$0xf]
  %v147 = vld [vmem:[%s3 + $0x30] sm:$0xf]
  %v148 = vld [vmem:[%s3 + $0x34] sm:$0xf]
  %v149 = vld [vmem:[%s3 + $0x38] sm:$0xf]
  %v150 = vld [vmem:[%s3 + $0x3c] sm:$0xf]
  %v151 = vld [vmem:[%s4] sm:$0x1]
  %v153 = vlaneseq
  %v154 = vshrl.u32 %v153, 7
  %v155 = vsub.s32 0, %v154
  %v156 = vrot.slane %v151, %v155
  %v174 = vunpack.c.l.b16 %v135
  %v175 = vunpack.c.l.b16 %v136
  %v176 = vunpack.c.l.b16 %v137
  %v177 = vunpack.c.l.b16 %v138
  %v178 = vunpack.c.l.b16 %v139
  %v179 = vunpack.c.l.b16 %v140
  %v180 = vunpack.c.l.b16 %v141
  %v181 = vunpack.c.l.b16 %v142
  %v182 = vunpack.c.l.b16 %v143
  %v183 = vunpack.c.l.b16 %v144
  %v184 = vunpack.c.l.b16 %v145
  %v185 = vunpack.c.l.b16 %v146
  %v186 = vunpack.c.l.b16 %v147
  %v187 = vunpack.c.l.b16 %v148
  %v188 = vunpack.c.l.b16 %v149
  %v189 = vunpack.c.l.b16 %v150
  %v190 = vpack.c.b16 %v175, %v174
  %v191 = vpack.c.b16 %v177, %v176
  %v192 = vpack.c.b16 %v179, %v178
  %v193 = vpack.c.b16 %v181, %v180
  %v194 = vpack.c.b16 %v183, %v182
  %v195 = vpack.c.b16 %v185, %v184
  %v196 = vpack.c.b16 %v187, %v186
  %v197 = vpack.c.b16 %v189, %v188
  %206 = vmatprep.subr.bf16.mxu0 0
  %207 = vmatpush1.bf16.msra.mxu0 %v197
  %208 = vmatprep.subr.bf16.mxu0 0
  %209 = vmatpush1.bf16.msra.mxu0 %v196
  %210 = vmatprep.subr.bf16.mxu0 0
  %211 = vmatpush1.bf16.msra.mxu0 %v195
  %212 = vmatprep.subr.bf16.mxu0 0
  %213 = vmatpush1.bf16.msra.mxu0 %v194
  %214 = vmatprep.subr.bf16.mxu0 0
  %215 = vmatpush1.bf16.msra.mxu0 %v193
  %216 = vmatprep.subr.bf16.mxu0 0
  %217 = vmatpush1.bf16.msra.mxu0 %v192
  %218 = vmatprep.subr.bf16.mxu0 0
  %219 = vmatpush1.bf16.msra.mxu0 %v191
  %220 = vmatprep.subr.bf16.mxu0 0
  %221 = vmatpush1.bf16.msra.mxu0 %v190
  %222 = vmatprep.subr.bf16.mxu0 0
  %223 = vmatpush2.bf16.msra.mxu0 0
  %224 = vmatprep.subr.bf16.mxu0 0
  %225 = vmatpush2.bf16.msra.mxu0 0
  %226 = vmatprep.subr.bf16.mxu0 0
  %227 = vmatpush2.bf16.msra.mxu0 0
  %228 = vmatprep.subr.bf16.mxu0 0
  %229 = vmatpush2.bf16.msra.mxu0 0
  %230 = vmatprep.subr.bf16.mxu0 0
  %231 = vmatpush2.bf16.msra.mxu0 0
  %232 = vmatprep.subr.bf16.mxu0 0
  %233 = vmatpush2.bf16.msra.mxu0 0
  %234 = vmatprep.subr.bf16.mxu0 0
  %235 = vmatpush2.bf16.msra.mxu0 0
  %236 = vmatprep.subr.bf16.mxu0 0
  %237 = vmatpush2.bf16.msra.mxu0 0
  %238 = vmatprep.mubr.bf16.mxu0 0
  %239 = vmatmul.mubr.bf16.gmra.mxu0 %v134
  %v240 = vpop.f32.mrf.mxu0
  %v241 = vadd.f32 %v156, %v240
  %v242 = vpop.f32.mrf.mxu0
  %v243 = vpop.f32.mrf.mxu0
  %v244 = vpop.f32.mrf.mxu0
  %245 = vdwg.mxu0
  %246 = vst [vmem:[%s5] sm:$0xff] %v241
  // Predicated region
  $region22: #{mlp_forward.1} parent=0 // pred_check
    _
  $region23: #{mlp_forward.1} parent=0 // pred_check_branch
    %248 = sbr.rel (0) target = $region25
  $region24: #{mlp_forward.1} parent=0 // pred_region
    _
  $region25: #{mlp_forward.1} parent=0 // pred_fallthru
    _
  // Predicated region
  $region26: #{mlp_forward.1} parent=0 // pred_check
    _
  $region27: #{mlp_forward.1} parent=0 // pred_check_branch
    %250 = sbr.rel (0) target = $region29
  $region28: #{mlp_forward.1} parent=0 // pred_region
    _
  $region29: #{mlp_forward.1} parent=0 // pred_fallthru
    _

</llo_original>
